<compile_context>
chip_gen: v7x
topology: tpu7x:2x2x1
jax: 0.10.0
libtpu: 0.0.40
codegen_flags: <defaults>
</compile_context>

<pallas_src>
import functools
import numpy as np
import jax
import jax.numpy as jnp
from jax.experimental import pallas as pl
from jax.experimental.pallas import tpu as pltpu


def expert_kernel(x_ref, w1_ref, b1_ref, w2_ref, b2_ref, labels_ref, invt_ref,
                  logits_ref, pred_ref, nll_ref, acc_ref):
    b = pl.program_id(0)
    t = pl.program_id(1)
    nt = pl.num_programs(1)
    b_blk, t_blk, _ = x_ref.shape

    @pl.when(t == 0)
    def _init():
        acc_ref[...] = jnp.zeros_like(acc_ref)

    # ---- streaming reduction on the MXU: sum_t x == ones(1,t) @ x (bf16 in, f32 acc) ----
    ones = jnp.ones((1, t_blk), x_ref.dtype)
    for i in range(b_blk):                       # b_blk is small & static -> unrolled
        acc_ref[i:i + 1, :] += jnp.dot(ones, x_ref[i],
                                       preferred_element_type=jnp.float32)

    @pl.when(t == nt - 1)
    def _finalize():
        C = w2_ref.shape[1]

        # mean over the *true* pad_sequence length (runtime scalar; padded rows add 0)
        pooled = acc_ref[...] * invt_ref[0]

        # connector: Linear(D -> H), then classifier: Linear(H -> C)
        h = jnp.dot(pooled, w1_ref[...],
                    preferred_element_type=jnp.float32) + b1_ref[...]
        logits = jnp.dot(h, w2_ref[...],
                         preferred_element_type=jnp.float32) + b2_ref[...]
        logits_ref[...] = logits.reshape(logits_ref.shape)

        col = jax.lax.broadcasted_iota(jnp.int32, (b_blk, C), 1)
        maxv = jnp.max(logits, axis=-1, keepdims=True)
        # torch .max(dim=-1).indices returns the first maximal index
        pred = jnp.min(jnp.where(logits == maxv, col, jnp.int32(C)),
                       axis=-1, keepdims=True)
        pred_ref[...] = pred.reshape(pred_ref.shape)

        # ---- per-example CrossEntropy NLL (batch mean is a tiny wrapper op) ----
        shifted = logits - maxv
        lse = jnp.log(jnp.sum(jnp.exp(shifted), axis=-1, keepdims=True))
        logprobs = shifted - lse                                  # (b_blk, C)

        row = jax.lax.broadcasted_iota(jnp.int32, (b_blk, C), 0)
        onehot = jnp.zeros((b_blk, C), jnp.float32)
        for i in range(b_blk):
            lbl = labels_ref[b * b_blk + i]                       # scalar SMEM read
            onehot = jnp.where((row == i) & (col == lbl), 1.0, onehot)
        nll = -jnp.sum(logprobs * onehot, axis=-1, keepdims=True)
        nll_ref[...] = nll.reshape(nll_ref.shape)


def _next_pow2(n):
    return 1 << max(0, int(n - 1).bit_length())


def _vmem_budgets():
    """(per-buffer feature-tile bytes, vmem_limit_bytes), generation-aware."""
    try:
        cap = pltpu.get_tpu_info().vmem_capacity_bytes
    except Exception:
        cap = 64 * 1024 * 1024                       # assume the smallest (v7x) VMEM
    if cap >= 96 * 1024 * 1024:                      # v5e / v6e: 128 MiB physical
        return 24 * 1024 * 1024, 64 * 1024 * 1024
    return 8 * 1024 * 1024, 32 * 1024 * 1024         # v7x: 64 MiB phys / 32 MiB scoped


def _pick_time_block(b_block, t_total, d, itemsize, per_buffer_bytes):
    """Largest power-of-two time tile whose single-buffer footprint fits the budget.

    Sized by bytes (not row count) so each DMA is multi-MiB and the ~0.35 us
    per-grid-step overhead is amortized even when b_block * D is small.
    """
    rows = per_buffer_bytes // max(b_block * d * itemsize, 1)
    if t_total <= max(rows, 8):
        return t_total                               # one full-length tile
    blk = 1 << (max(int(rows), 8).bit_length() - 1)  # power of two <= rows
    return max(8, min(blk, t_total))


@functools.partial(jax.jit, static_argnames=("t_block", "b_block", "vmem_limit"))
def _forward_padded(x, w1, b1, w2, b2, labels1d, inv_t, *, t_block, b_block, vmem_limit):
    """x: (B, T_pad, D) zero-padded bf16; labels1d: (B,) int32; inv_t: (1,) f32."""
    B, T_pad, D = x.shape
    H = w1.shape[1]
    C = w2.shape[1]
    nb = B // b_block
    nt = T_pad // t_block

    grid_spec = pltpu.PrefetchScalarGridSpec(
        num_scalar_prefetch=0,
        grid=(nb, nt),
        in_specs=[
            pl.BlockSpec((b_block, t_block, D), lambda b, t: (b, t, 0)),   # features (bf16)
            pl.BlockSpec((D, H), lambda b, t: (0, 0)),                     # connector weight
            pl.BlockSpec((1, H), lambda b, t: (0, 0)),                     # connector bias
            pl.BlockSpec((H, C), lambda b, t: (0, 0)),                     # classifier weight
            pl.BlockSpec((1, C), lambda b, t: (0, 0)),                     # classifier bias
            pl.BlockSpec(memory_space=pltpu.MemorySpace.SMEM),             # labels (B,)
            pl.BlockSpec(memory_space=pltpu.MemorySpace.SMEM),             # 1/true_T (1,)
        ],
        out_specs=[
            pl.BlockSpec((1, b_block, C), lambda b, t: (b, 0, 0)),         # logits
            pl.BlockSpec((1, b_block, 1), lambda b, t: (b, 0, 0)),         # predicted class id
            pl.BlockSpec((1, b_block, 1), lambda b, t: (b, 0, 0)),         # per-example NLL
        ],
        scratch_shapes=[pltpu.VMEM((b_block, D), jnp.float32)],            # time-sum accumulator
    )

    flops = 2 * B * T_pad * D + 2 * B * D * H + 2 * B * H * C
    bytes_accessed = (x.size * x.dtype.itemsize
                      + (w1.size + b1.size + w2.size + b2.size) * 4
                      + (labels1d.size + inv_t.size) * 4
                      + B * (C + 2) * 4)

    logits3, pred3, nll3 = pl.pallas_call(
        expert_kernel,
        grid_spec=grid_spec,
        out_shape=(
            jax.ShapeDtypeStruct((nb, b_block, C), jnp.float32),
            jax.ShapeDtypeStruct((nb, b_block, 1), jnp.int32),
            jax.ShapeDtypeStruct((nb, b_block, 1), jnp.float32),
        ),
        compiler_params=pltpu.CompilerParams(
            dimension_semantics=("parallel", "arbitrary"),
            vmem_limit_bytes=vmem_limit,
        ),
        cost_estimate=pl.CostEstimate(
            flops=flops, transcendentals=B * (C + 1), bytes_accessed=bytes_accessed),
    )(x, w1, b1, w2, b2, labels1d, inv_t)

    logits = logits3.reshape(B, C)
    pred = pred3.reshape(B)
    loss = jnp.mean(nll3.reshape(B))     # CrossEntropyLoss(reduction='mean') over the batch
    return logits, pred, loss


def downstream_forward(features, w1, b1, w2, b2, labels, *, t_block=None, b_block=None):
    """features: list of variable-length (T_i, D) float arrays; labels: (B,) ints."""
    B = len(features)
    D = features[0].shape[-1]
    T = max(int(f.shape[0]) for f in features)

    if b_block is None:
        # batch grid axis >= 2 so v7x's two TensorCores each stream part of the batch;
        # it is just a sequential loop (harmless) on single-core v5e/v6e.
        b_block = B // 2 if (B % 2 == 0 and B >= 2) else B
    assert B % b_block == 0

    per_buf, vmem_limit = _vmem_budgets()

    # Bucket the padded length to a power of two so variable-length batches reuse a
    # small set of compiled kernels; the true 1/T is a runtime scalar (no recompiles).
    t_bucket = max(8, _next_pow2(T))
    if t_block is None:
        t_block = _pick_time_block(b_block, t_bucket, D, 2, per_buf)
    t_pad = ((t_bucket + t_block - 1) // t_block) * t_block

    # pad_sequence(batch_first=True) equivalent: cast each feature to bf16 FIRST, then
    # zero-pad/stack, so no full-size f32 padded copy is ever written to HBM.
    x = jnp.stack([
        jnp.pad(jnp.asarray(f).astype(jnp.bfloat16), ((0, t_pad - f.shape[0]), (0, 0)))
        for f in features])

    labels1d = jnp.asarray(labels, jnp.int32).reshape(B)
    inv_t = jnp.full((1,), 1.0 / float(T), jnp.float32)
    return _forward_padded(x, w1, b1, w2, b2, labels1d, inv_t,
                           t_block=int(t_block), b_block=int(b_block),
                           vmem_limit=int(vmem_limit))


if __name__ == "__main__":
    key = jax.random.PRNGKey(0)
    UPSTREAM_DIM = 32     # upstream representation dim
    INPUT_DIM = 16        # modelrc['input_dim']
    CLASS_NUM = 10        # RandomDataset.class_num
    B = 2
    lengths = [16, 11]    # variable-length utterances

    k_feat, k_w1, k_b1, k_w2, k_b2, k_lbl = jax.random.split(key, 6)
    feats = [jax.random.normal(jax.random.fold_in(k_feat, i), (L, UPSTREAM_DIM), jnp.float32)
             for i, L in enumerate(lengths)]

    # deterministic synthetic nn.Linear parameters, stored as (in, out)
    w1 = 0.1 * jax.random.normal(k_w1, (UPSTREAM_DIM, INPUT_DIM), jnp.float32)
    b1 = 0.1 * jax.random.normal(k_b1, (1, INPUT_DIM), jnp.float32)
    w2 = 0.1 * jax.random.normal(k_w2, (INPUT_DIM, CLASS_NUM), jnp.float32)
    b2 = 0.1 * jax.random.normal(k_b2, (1, CLASS_NUM), jnp.float32)
    labels = jax.random.randint(k_lbl, (B,), 0, CLASS_NUM, dtype=jnp.int32)

    logits, pred, loss = downstream_forward(feats, w1, b1, w2, b2, labels)
    jax.block_until_ready((logits, pred, loss))

    # pure-JAX reference of the exact forward semantics (on the same bf16-cast inputs)
    T = max(lengths)
    x_pad = jnp.stack([jnp.pad(f.astype(jnp.bfloat16), ((0, T - f.shape[0]), (0, 0)))
                       for f in feats]).astype(jnp.float32)
    h = jnp.einsum("btd,dh->bth", x_pad, w1) + b1[0]
    pooled = h.mean(axis=1)
    ref_logits = pooled @ w2 + b2[0]
    ref_logp = jax.nn.log_softmax(ref_logits, axis=-1)
    ref_loss = -jnp.mean(ref_logp[jnp.arange(B), labels])
    ref_pred = jnp.argmax(ref_logits, axis=-1)

    assert np.allclose(np.asarray(logits), np.asarray(ref_logits), atol=1e-4)
    assert np.allclose(np.asarray(loss), np.asarray(ref_loss), atol=1e-4)
    assert np.array_equal(np.asarray(pred), np.asarray(ref_pred))
    print("KERNEL_OK")
</pallas_src>

<mosaic_0001>
module attributes {stable_mosaic.version = 11 : i64} {
  func.func @expert_kernel(%arg0: i32, %arg1: i32, %arg2: memref<1x16x32xbf16, #tpu.memory_space<vmem>>, %arg3: memref<32x16xf32, #tpu.memory_space<vmem>>, %arg4: memref<1x16xf32, #tpu.memory_space<vmem>>, %arg5: memref<16x10xf32, #tpu.memory_space<vmem>>, %arg6: memref<1x10xf32, #tpu.memory_space<vmem>>, %arg7: memref<2xi32, #tpu.memory_space<smem>>, %arg8: memref<1xf32, #tpu.memory_space<smem>>, %arg9: memref<1x1x10xf32, #tpu.memory_space<vmem>>, %arg10: memref<1x1x1xi32, #tpu.memory_space<vmem>>, %arg11: memref<1x1x1xf32, #tpu.memory_space<vmem>>, %arg12: memref<1x32xf32, #tpu.memory_space<vmem>>) attributes {dimension_semantics = [#tpu.dimension_semantics<parallel>, #tpu.dimension_semantics<arbitrary>], iteration_bounds = array<i64: 2, 1>, scalar_prefetch = 0 : i64, scratch_operands = 1 : i64, tpu.core_type = #tpu.core_type<tc>, window_params = [{transform_indices = @transform_0, window_bounds = array<i64: 1, 16, 32>}, {pipeline_mode = #tpu.pipeline_mode<synchronous>, transform_indices = @transform_1, window_bounds = array<i64: 32, 16>}, {pipeline_mode = #tpu.pipeline_mode<synchronous>, transform_indices = @transform_2, window_bounds = array<i64: 1, 16>}, {pipeline_mode = #tpu.pipeline_mode<synchronous>, transform_indices = @transform_3, window_bounds = array<i64: 16, 10>}, {pipeline_mode = #tpu.pipeline_mode<synchronous>, transform_indices = @transform_4, window_bounds = array<i64: 1, 10>}, {transform_indices = @transform_5, window_bounds = array<i64: 2>}, {transform_indices = @transform_6, window_bounds = array<i64: 1>}, {transform_indices = @transform_7, window_bounds = array<i64: 1, 1, 10>}, {transform_indices = @transform_8, window_bounds = array<i64: 1, 1, 1>}, {transform_indices = @transform_9, window_bounds = array<i64: 1, 1, 1>}]} {
    %c0_i32 = arith.constant 0 : i32
    %0 = arith.cmpi eq, %arg1, %c0_i32 : i32
    %1 = arith.extui %0 : i1 to i32
    %c0_i32_0 = arith.constant 0 : i32
    %2 = arith.cmpi ne, %1, %c0_i32_0 : i32
    scf.if %2 {
      %cst_10 = arith.constant 0.000000e+00 : f32
      %13 = vector.broadcast %cst_10 : f32 to vector<1x32xf32>
      %c0_11 = arith.constant 0 : index
      %c0_12 = arith.constant 0 : index
      %14 = vector.load %arg12[%c0_11, %c0_12] : memref<1x32xf32, #tpu.memory_space<vmem>>, vector<1x32xf32>
      tpu.vector_store %arg12[%c0_11, %c0_12], %13 {strides = array<i32>} : memref<1x32xf32, #tpu.memory_space<vmem>>, vector<1x32xf32>,
    } else {
    }
    %cst = arith.constant 1.000000e+00 : bf16
    %3 = vector.broadcast %cst : bf16 to vector<1x16xbf16>
    %c0 = arith.constant 0 : index
    %c0_1 = arith.constant 0 : index
    %4 = vector.load %arg12[%c0, %c0_1] : memref<1x32xf32, #tpu.memory_space<vmem>>, vector<1x32xf32>
    %c0_2 = arith.constant 0 : index
    %c0_3 = arith.constant 0 : index
    %c0_4 = arith.constant 0 : index
    %5 = vector.load %arg2[%c0_2, %c0_3, %c0_4] : memref<1x16x32xbf16, #tpu.memory_space<vmem>>, vector<1x16x32xbf16>
    %6 = vector.shape_cast %5 : vector<1x16x32xbf16> to vector<16x32xbf16>
    %cst_5 = arith.constant dense<0.000000e+00> : vector<1x32xf32>
    %7 = tpu.matmul %3, %6, %cst_5 {dimension_numbers = #tpu.dot_dimension_numbers<[1], [0], [0], [1], [0, 0, 1, 1], [], []>} : vector<1x16xbf16>, vector<16x32xbf16>, vector<1x32xf32> -> vector<1x32xf32>
    %8 = arith.addf %4, %7 : vector<1x32xf32>
    %c0_6 = arith.constant 0 : index
    %c0_7 = arith.constant 0 : index
    %9 = vector.load %arg12[%c0_6, %c0_7] : memref<1x32xf32, #tpu.memory_space<vmem>>, vector<1x32xf32>
    tpu.vector_store %arg12[%c0_6, %c0_7], %8 {strides = array<i32>} : memref<1x32xf32, #tpu.memory_space<vmem>>, vector<1x32xf32>,
    %c0_i32_8 = arith.constant 0 : i32
    %10 = arith.cmpi eq, %arg1, %c0_i32_8 : i32
    %11 = arith.extui %10 : i1 to i32
    %c0_i32_9 = arith.constant 0 : i32
    %12 = arith.cmpi ne, %11, %c0_i32_9 : i32
    scf.if %12 {
      %c0_10 = arith.constant 0 : index
      %c0_11 = arith.constant 0 : index
      %13 = vector.load %arg12[%c0_10, %c0_11] : memref<1x32xf32, #tpu.memory_space<vmem>>, vector<1x32xf32>
      %c0_12 = arith.constant 0 : index
      %14 = memref.load %arg8[%c0_12] : memref<1xf32, #tpu.memory_space<smem>>
      %15 = vector.broadcast %14 : f32 to vector<1x32xf32>
      %16 = arith.mulf %13, %15 : vector<1x32xf32>
      %c0_13 = arith.constant 0 : index
      %c0_14 = arith.constant 0 : index
      %17 = vector.load %arg3[%c0_13, %c0_14] : memref<32x16xf32, #tpu.memory_space<vmem>>, vector<32x16xf32>
      %cst_15 = arith.constant dense<0.000000e+00> : vector<1x16xf32>
      %18 = tpu.matmul %16, %17, %cst_15 {dimension_numbers = #tpu.dot_dimension_numbers<[1], [0], [0], [1], [0, 0, 1, 1], [], []>} : vector<1x32xf32>, vector<32x16xf32>, vector<1x16xf32> -> vector<1x16xf32>
      %c0_16 = arith.constant 0 : index
      %c0_17 = arith.constant 0 : index
      %19 = vector.load %arg4[%c0_16, %c0_17] : memref<1x16xf32, #tpu.memory_space<vmem>>, vector<1x16xf32>
      %20 = arith.addf %18, %19 : vector<1x16xf32>
      %c0_18 = arith.constant 0 : index
      %c0_19 = arith.constant 0 : index
      %21 = vector.load %arg5[%c0_18, %c0_19] : memref<16x10xf32, #tpu.memory_space<vmem>>, vector<16x10xf32>
      %cst_20 = arith.constant dense<0.000000e+00> : vector<1x10xf32>
      %22 = tpu.matmul %20, %21, %cst_20 {dimension_numbers = #tpu.dot_dimension_numbers<[1], [0], [0], [1], [0, 0, 1, 1], [], []>} : vector<1x16xf32>, vector<16x10xf32>, vector<1x10xf32> -> vector<1x10xf32>
      %c0_21 = arith.constant 0 : index
      %c0_22 = arith.constant 0 : index
      %23 = vector.load %arg6[%c0_21, %c0_22] : memref<1x10xf32, #tpu.memory_space<vmem>>, vector<1x10xf32>
      %24 = arith.addf %22, %23 : vector<1x10xf32>
      %25 = vector.shape_cast %24 : vector<1x10xf32> to vector<1x1x10xf32>
      %c0_23 = arith.constant 0 : index
      %c0_24 = arith.constant 0 : index
      %c0_25 = arith.constant 0 : index
      %26 = vector.load %arg9[%c0_23, %c0_24, %c0_25] : memref<1x1x10xf32, #tpu.memory_space<vmem>>, vector<1x1x10xf32>
      tpu.vector_store %arg9[%c0_23, %c0_24, %c0_25], %25 {strides = array<i32>} : memref<1x1x10xf32, #tpu.memory_space<vmem>>, vector<1x1x10xf32>,
      %27 = tpu.iota {dimensions = array<i32: 1>} : vector<1x10xi32>
      %cst_26 = arith.constant dense<0xFF800000> : vector<1xf32>
      %28 = vector.multi_reduction <maximumf>, %24, %cst_26 [1] : vector<1x10xf32> to vector<1xf32>
      %29 = vector.shape_cast %28 : vector<1xf32> to vector<1x1xf32>
      %30 = vector.broadcast %29 : vector<1x1xf32> to vector<1x10xf32>
      %31 = arith.cmpf oeq, %24, %30 : vector<1x10xf32>
      %c10_i32 = arith.constant 10 : i32
      %32 = vector.broadcast %c10_i32 : i32 to vector<1x10xi32>
      %33 = arith.select %31, %27, %32 : vector<1x10xi1>, vector<1x10xi32>
      %cst_27 = arith.constant dense<2147483647> : vector<1xi32>
      %34 = vector.multi_reduction <minsi>, %33, %cst_27 [1] : vector<1x10xi32> to vector<1xi32>
      %35 = vector.shape_cast %34 : vector<1xi32> to vector<1x1xi32>
      %36 = vector.shape_cast %35 : vector<1x1xi32> to vector<1x1x1xi32>
      %c0_28 = arith.constant 0 : index
      %c0_29 = arith.constant 0 : index
      %c0_30 = arith.constant 0 : index
      %37 = vector.load %arg10[%c0_28, %c0_29, %c0_30] : memref<1x1x1xi32, #tpu.memory_space<vmem>>, vector<1x1x1xi32>
      tpu.vector_store %arg10[%c0_28, %c0_29, %c0_30], %36 {strides = array<i32>} : memref<1x1x1xi32, #tpu.memory_space<vmem>>, vector<1x1x1xi32>,
      %38 = vector.broadcast %29 : vector<1x1xf32> to vector<1x10xf32>
      %39 = arith.subf %24, %38 : vector<1x10xf32>
      %40 = math.exp %39 : vector<1x10xf32>
      %cst_31 = arith.constant dense<0.000000e+00> : vector<1xf32>
      %41 = vector.multi_reduction <add>, %40, %cst_31 [1] : vector<1x10xf32> to vector<1xf32>
      %42 = vector.shape_cast %41 : vector<1xf32> to vector<1x1xf32>
      %43 = math.log %42 : vector<1x1xf32>
      %44 = vector.broadcast %43 : vector<1x1xf32> to vector<1x10xf32>
      %45 = arith.subf %39, %44 : vector<1x10xf32>
      %46 = tpu.iota {dimensions = array<i32: 0>} : vector<1x10xi32>
      %cst_32 = arith.constant 0.000000e+00 : f32
      %47 = vector.broadcast %cst_32 : f32 to vector<1x10xf32>
      %c1_i32 = arith.constant 1 : i32
      %48 = arith.muli %arg0, %c1_i32 : i32
      %c0_i32_33 = arith.constant 0 : i32
      %49 = arith.addi %48, %c0_i32_33 : i32
      %50 = arith.index_cast %49 : i32 to index
      %51 = memref.load %arg7[%50] : memref<2xi32, #tpu.memory_space<smem>>
      %c0_i32_34 = arith.constant 0 : i32
      %52 = vector.broadcast %c0_i32_34 : i32 to vector<1x10xi32>
      %53 = arith.cmpi eq, %46, %52 : vector<1x10xi32>
      %54 = vector.broadcast %51 : i32 to vector<1x10xi32>
      %55 = arith.cmpi eq, %27, %54 : vector<1x10xi32>
      %56 = arith.andi %53, %55 : vector<1x10xi1>
      %cst_35 = arith.constant 1.000000e+00 : f32
      %57 = vector.broadcast %cst_35 : f32 to vector<1x10xf32>
      %58 = arith.select %56, %57, %47 : vector<1x10xi1>, vector<1x10xf32>
      %59 = arith.mulf %45, %58 : vector<1x10xf32>
      %cst_36 = arith.constant dense<0.000000e+00> : vector<1xf32>
      %60 = vector.multi_reduction <add>, %59, %cst_36 [1] : vector<1x10xf32> to vector<1xf32>
      %61 = vector.shape_cast %60 : vector<1xf32> to vector<1x1xf32>
      %cst_37 = arith.constant 0.000000e+00 : f32
      %62 = vector.broadcast %cst_37 : f32 to vector<1x1xf32>
      %63 = arith.subf %62, %61 : vector<1x1xf32>
      %64 = vector.shape_cast %63 : vector<1x1xf32> to vector<1x1x1xf32>
      %c0_38 = arith.constant 0 : index
      %c0_39 = arith.constant 0 : index
      %c0_40 = arith.constant 0 : index
      %65 = vector.load %arg11[%c0_38, %c0_39, %c0_40] : memref<1x1x1xf32, #tpu.memory_space<vmem>>, vector<1x1x1xf32>
      tpu.vector_store %arg11[%c0_38, %c0_39, %c0_40], %64 {strides = array<i32>} : memref<1x1x1xf32, #tpu.memory_space<vmem>>, vector<1x1x1xf32>,
    } else {
    }
    return
  }
  func.func @transform_0(%arg0: i32, %arg1: i32) -> (i32, i32, i32) {
    %c0_i32 = arith.constant 0 : i32
    %c0_i32_0 = arith.constant 0 : i32
    return %arg0, %arg1, %c0_i32 : i32, i32, i32
  }
  func.func @transform_1(%arg0: i32, %arg1: i32) -> (i32, i32) {
    %c0_i32 = arith.constant 0 : i32
    %c0_i32_0 = arith.constant 0 : i32
    %c0_i32_1 = arith.constant 0 : i32
    return %c0_i32, %c0_i32_0 : i32, i32
  }
  func.func @transform_2(%arg0: i32, %arg1: i32) -> (i32, i32) {
    %c0_i32 = arith.constant 0 : i32
    %c0_i32_0 = arith.constant 0 : i32
    %c0_i32_1 = arith.constant 0 : i32
    return %c0_i32, %c0_i32_0 : i32, i32
  }
  func.func @transform_3(%arg0: i32, %arg1: i32) -> (i32, i32) {
    %c0_i32 = arith.constant 0 : i32
    %c0_i32_0 = arith.constant 0 : i32
    %c0_i32_1 = arith.constant 0 : i32
    return %c0_i32, %c0_i32_0 : i32, i32
  }
  func.func @transform_4(%arg0: i32, %arg1: i32) -> (i32, i32) {
    %c0_i32 = arith.constant 0 : i32
    %c0_i32_0 = arith.constant 0 : i32
    %c0_i32_1 = arith.constant 0 : i32
    return %c0_i32, %c0_i32_0 : i32, i32
  }
  func.func @transform_5(%arg0: i32, %arg1: i32) -> i32 {
    %c0_i32 = arith.constant 0 : i32
    %c0_i32_0 = arith.constant 0 : i32
    return %c0_i32 : i32
  }
  func.func @transform_6(%arg0: i32, %arg1: i32) -> i32 {
    %c0_i32 = arith.constant 0 : i32
    %c0_i32_0 = arith.constant 0 : i32
    return %c0_i32 : i32
  }
  func.func @transform_7(%arg0: i32, %arg1: i32) -> (i32, i32, i32) {
    %c0_i32 = arith.constant 0 : i32
    %c0_i32_0 = arith.constant 0 : i32
    %c0_i32_1 = arith.constant 0 : i32
    return %arg0, %c0_i32, %c0_i32_0 : i32, i32, i32
  }
  func.func @transform_8(%arg0: i32, %arg1: i32) -> (i32, i32, i32) {
    %c0_i32 = arith.constant 0 : i32
    %c0_i32_0 = arith.constant 0 : i32
    %c0_i32_1 = arith.constant 0 : i32
    return %arg0, %c0_i32, %c0_i32_0 : i32, i32, i32
  }
  func.func @transform_9(%arg0: i32, %arg1: i32) -> (i32, i32, i32) {
    %c0_i32 = arith.constant 0 : i32
    %c0_i32_0 = arith.constant 0 : i32
    %c0_i32_1 = arith.constant 0 : i32
    return %arg0, %c0_i32, %c0_i32_0 : i32, i32, i32
  }
}

</mosaic_0001>

<llo_original>
// kernel: _forward_padded.1
$region0: #{_forward_padded.1}
  #allocation0 [shape = 'u32[]', space=smem, size = 0x4, offset = 0x4, fixed_abs, tag = 'smem constant byte address 0x4 - core index']
  #allocation1 [shape = 'u32[144,128]{1,0:T(1,128)}', space=vmem, size = 0x12000, scoped, tag = 'internal scratch']
  #allocation2 [shape = 'f32[1,32]{1,0:T(1,128)}', space=vmem, size = 0x200, scoped, tag = 'scratch operand']
  #allocation3 [shape = 'f32[1]{0:T(128)S(6)}', space=smem, size = 0x200, scoped, tag = 'scoped memory for _forward_padded.1']
  %s0 = inlined_call_operand.vmem [shape: bf16[2,16,32], index: 0, kind: input, shape index: {}]
  %s1 = inlined_call_operand.vmem [shape: f32[32,16], index: 1, kind: input, shape index: {}]
  %s2 = inlined_call_operand.vmem [shape: f32[1,16], index: 2, kind: input, shape index: {}]
  %s3 = inlined_call_operand.vmem [shape: f32[16,10], index: 3, kind: input, shape index: {}]
  %s4 = inlined_call_operand.vmem [shape: f32[1,10], index: 4, kind: input, shape index: {}]
  %s5 = inlined_call_operand.vmem [shape: s32[2], index: 5, kind: input, shape index: {}]
  %s6 = inlined_call_operand.<no memory space> [shape: f32[1], index: 6, kind: input, shape index: {}]
  %s7 = inlined_call_operand.hbm [shape: f32[2,1,10], index: 7, kind: output, shape index: {0}]
  %s8 = inlined_call_operand.vmem [shape: s32[2,1,1], index: 8, kind: output, shape index: {1}]
  %s9 = inlined_call_operand.vmem [shape: f32[2,1,1], index: 9, kind: output, shape index: {2}]
  %10 = xla_tuple %s7, %s8, %s9
  %s11 = sld [smem:[#allocation0]]
  $region89: #{_forward_padded.1} parent=0
    _
  %s13 = ssub.s32 1, %s11
  %s14 = scalar_select 0, %s13, %s11
  %15 = sst [smem:[#allocation3]] %s6
  $region1: #{_forward_padded.1} parent=0
    #allocation4 [shape = 'u8[512]{0}', space=smem, size = 0x200, scoped, tag = 'input window, operand 5, single buffered']
    #allocation5 [shape = 's32[2]{0}', space=sflag, size = 0x8, scoped, tag = 'scoped memory for _forward_padded.1']
    #allocation6 [shape = 's32[2]{0}', space=sflag, size = 0x8, scoped, tag = 'scoped memory for _forward_padded.1']
    #allocation7 [shape = 'u8[1024]{0}', space=vmem, size = 0x400, scoped, tag = 'output window, operand 0']
    %16 = vsyncpa [#allocation6], 0
    %17 = vsyncpa [#allocation5], 0
    %s18 = scalar_lea.sflag [#allocation5], 1
    %19 = vsyncpa %s18, 0
    loop: start=0, step=1, limit=4
    $region2: #{_forward_padded.1} parent=1 // loop_pre_header
      _
    $region3: #{_forward_padded.1} parent=1 // loop_header
      %s21 = sphi 0, %s25
      %p22 = scmp.ge.s32.totalorder %s21, 4
      %s28 = sphi 0, %s40
      %s29 = sphi 0, %s36
      %s30 = sphi 0, %s28
      %s31 = sphi 0, %s29
      %s32 = sphi 0, %s30
      %s33 = sphi 0, %s31
      %s45 = sphi 0, %s47
      %s48 = sphi 0, %s45
      %s49 = sphi 0, %s48
      %s65 = sphi 0, %s49
      %s69 = sphi 0, %s69
      %s71 = sphi 0, %s69
      %s72 = sphi 0, %s71
      %s86 = sphi 0, %s72
      %s90 = sphi 0, %s90
      %s92 = sphi 0, %s90
      %s93 = sphi 0, %s92
      %s107 = sphi 0, %s93
      %s111 = sphi 0, %s111
      %s113 = sphi 0, %s111
      %s114 = sphi 0, %s113
      %s128 = sphi 0, %s114
      %s132 = sphi 0, %s132
      %s134 = sphi 0, %s132
      %s135 = sphi 0, %s134
      %s149 = sphi 0, %s135
      %s153 = sphi 0, %s153
      %s155 = sphi 0, %s153
      %s156 = sphi 0, %s155
      %s170 = sphi 0, %s156
      %s174 = sphi 0, %s174
      %s176 = sphi 0, %s174
      %s177 = sphi 0, %s176
      %s191 = sphi 0, %s177
      %s197 = sphi 0, %s199
      %s200 = sphi 0, %s197
      %s201 = sphi 0, %s200
      %s217 = sphi 0, %s201
      %s223 = sphi 0, %s225
      %s226 = sphi 0, %s223
      %s227 = sphi 0, %s226
      %s243 = sphi 0, %s227
      %s249 = sphi 0, %s251
      %s252 = sphi 0, %s249
      %s253 = sphi 0, %s252
      %s269 = sphi 0, %s253
    $region4: #{_forward_padded.1} parent=1 // loop_header_branch
      %24 = sbr.rel (%p22) target = $region8
    $region5: #{_forward_padded.1} parent=1 // loop_body
      %s26 = ssub.s32 %s21, 1
      %s27 = ssub.s32 %s21, 2
      %s34 = sadd.s32 1, %s29
      %p35 = scmp.ge.s32.totalorder %s34, 1
      %s36 = scalar_select %p35, 0, %s34
      %s37 = sadd.s32 1, %s28
      %s38 = scalar_select %p35, %s37, %s28
      %p39 = scmp.ge.s32.totalorder %s38, 2
      %s40 = scalar_select %p39, 0, %s38
      %s41 = ssub.s32 %s28, %s40
      %s42 = ssub.s32 %s29, %s36
      %s43 = sor.u32 %s41, %s42
      %p44 = scmp.eq.s32.totalorder %s43, 0
      %s46 = sadd.s32 %s45, 1
      %s47 = scalar_select %p44, %s45, %s46
      %p50 = pneg %p44
      %p51 = scmp.eq.s32.totalorder %s21, 1
      %p52 = por %p50, %p51
      %p53 = scmp.ne.s32.totalorder %s45, %s48
      %p54 = scmp.eq.s32.totalorder %s21, 0
      %p55 = por %p53, %p54
      %p56 = scmp.ne.s32.totalorder %s45, %s48
      %p57 = scmp.eq.s32.totalorder %s26, 1
      %p58 = por %p56, %p57
      %p59 = scmp.ne.s32.totalorder %s48, %s49
      %p60 = scmp.eq.s32.totalorder %s26, 0
      %p61 = por %p59, %p60
      %p62 = scmp.ne.s32.totalorder %s48, %s49
      %p63 = scmp.eq.s32.totalorder %s27, 1
      %p64 = por %p62, %p63
      %p66 = scmp.ne.s32.totalorder %s49, %s65
      %p67 = scmp.eq.s32.totalorder %s27, 0
      %p68 = por %p66, %p67
      %s70 = sadd.s32 %s69, 1
      %p73 = scmp.eq.s32.totalorder %s21, 1
      %p74 = scmp.ne.s32.totalorder %s69, %s71
      %p75 = scmp.eq.s32.totalorder %s21, 0
      %p76 = por %p74, %p75
      %p77 = scmp.ne.s32.totalorder %s69, %s71
      %p78 = scmp.eq.s32.totalorder %s26, 1
      %p79 = por %p77, %p78
      %p80 = scmp.ne.s32.totalorder %s71, %s72
      %p81 = scmp.eq.s32.totalorder %s26, 0
      %p82 = por %p80, %p81
      %p83 = scmp.ne.s32.totalorder %s71, %s72
      %p84 = scmp.eq.s32.totalorder %s27, 1
      %p85 = por %p83, %p84
      %p87 = scmp.ne.s32.totalorder %s72, %s86
      %p88 = scmp.eq.s32.totalorder %s27, 0
      %p89 = por %p87, %p88
      %s91 = sadd.s32 %s90, 1
      %p94 = scmp.eq.s32.totalorder %s21, 1
      %p95 = scmp.ne.s32.totalorder %s90, %s92
      %p96 = scmp.eq.s32.totalorder %s21, 0
      %p97 = por %p95, %p96
      %p98 = scmp.ne.s32.totalorder %s90, %s92
      %p99 = scmp.eq.s32.totalorder %s26, 1
      %p100 = por %p98, %p99
      %p101 = scmp.ne.s32.totalorder %s92, %s93
      %p102 = scmp.eq.s32.totalorder %s26, 0
      %p103 = por %p101, %p102
      %p104 = scmp.ne.s32.totalorder %s92, %s93
      %p105 = scmp.eq.s32.totalorder %s27, 1
      %p106 = por %p104, %p105
      %p108 = scmp.ne.s32.totalorder %s93, %s107
      %p109 = scmp.eq.s32.totalorder %s27, 0
      %p110 = por %p108, %p109
      %s112 = sadd.s32 %s111, 1
      %p115 = scmp.eq.s32.totalorder %s21, 1
      %p116 = scmp.ne.s32.totalorder %s111, %s113
      %p117 = scmp.eq.s32.totalorder %s21, 0
      %p118 = por %p116, %p117
      %p119 = scmp.ne.s32.totalorder %s111, %s113
      %p120 = scmp.eq.s32.totalorder %s26, 1
      %p121 = por %p119, %p120
      %p122 = scmp.ne.s32.totalorder %s113, %s114
      %p123 = scmp.eq.s32.totalorder %s26, 0
      %p124 = por %p122, %p123
      %p125 = scmp.ne.s32.totalorder %s113, %s114
      %p126 = scmp.eq.s32.totalorder %s27, 1
      %p127 = por %p125, %p126
      %p129 = scmp.ne.s32.totalorder %s114, %s128
      %p130 = scmp.eq.s32.totalorder %s27, 0
      %p131 = por %p129, %p130
      %s133 = sadd.s32 %s132, 1
      %p136 = scmp.eq.s32.totalorder %s21, 1
      %p137 = scmp.ne.s32.totalorder %s132, %s134
      %p138 = scmp.eq.s32.totalorder %s21, 0
      %p139 = por %p137, %p138
      %p140 = scmp.ne.s32.totalorder %s132, %s134
      %p141 = scmp.eq.s32.totalorder %s26, 1
      %p142 = por %p140, %p141
      %p143 = scmp.ne.s32.totalorder %s134, %s135
      %p144 = scmp.eq.s32.totalorder %s26, 0
      %p145 = por %p143, %p144
      %p146 = scmp.ne.s32.totalorder %s134, %s135
      %p147 = scmp.eq.s32.totalorder %s27, 1
      %p148 = por %p146, %p147
      %p150 = scmp.ne.s32.totalorder %s135, %s149
      %p151 = scmp.eq.s32.totalorder %s27, 0
      %p152 = por %p150, %p151
      %s154 = sadd.s32 %s153, 1
      %p157 = scmp.eq.s32.totalorder %s21, 1
      %p158 = scmp.ne.s32.totalorder %s153, %s155
      %p159 = scmp.eq.s32.totalorder %s21, 0
      %p160 = por %p158, %p159
      %p161 = scmp.ne.s32.totalorder %s153, %s155
      %p162 = scmp.eq.s32.totalorder %s26, 1
      %p163 = por %p161, %p162
      %p164 = scmp.ne.s32.totalorder %s155, %s156
      %p165 = scmp.eq.s32.totalorder %s26, 0
      %p166 = por %p164, %p165
      %p167 = scmp.ne.s32.totalorder %s155, %s156
      %p168 = scmp.eq.s32.totalorder %s27, 1
      %p169 = por %p167, %p168
      %p171 = scmp.ne.s32.totalorder %s156, %s170
      %p172 = scmp.eq.s32.totalorder %s27, 0
      %p173 = por %p171, %p172
      %s175 = sadd.s32 %s174, 1
      %p178 = scmp.eq.s32.totalorder %s21, 1
      %p179 = scmp.ne.s32.totalorder %s174, %s176
      %p180 = scmp.eq.s32.totalorder %s21, 0
      %p181 = por %p179, %p180
      %p182 = scmp.ne.s32.totalorder %s174, %s176
      %p183 = scmp.eq.s32.totalorder %s26, 1
      %p184 = por %p182, %p183
      %p185 = scmp.ne.s32.totalorder %s176, %s177
      %p186 = scmp.eq.s32.totalorder %s26, 0
      %p187 = por %p185, %p186
      %p188 = scmp.ne.s32.totalorder %s176, %s177
      %p189 = scmp.eq.s32.totalorder %s27, 1
      %p190 = por %p188, %p189
      %p192 = scmp.ne.s32.totalorder %s177, %s191
      %p193 = scmp.eq.s32.totalorder %s27, 0
      %p194 = por %p192, %p193
      %s195 = ssub.s32 %s28, %s40
      %p196 = scmp.eq.s32.totalorder %s195, 0
      %s198 = sadd.s32 %s197, 1
      %s199 = scalar_select %p196, %s197, %s198
      %p202 = pneg %p196
      %p203 = scmp.eq.s32.totalorder %s21, 1
      %p204 = por %p202, %p203
      %p205 = scmp.ne.s32.totalorder %s197, %s200
      %p206 = scmp.eq.s32.totalorder %s21, 0
      %p207 = por %p205, %p206
      %p208 = scmp.ne.s32.totalorder %s197, %s200
      %p209 = scmp.eq.s32.totalorder %s26, 1
      %p210 = por %p208, %p209
      %p211 = scmp.ne.s32.totalorder %s200, %s201
      %p212 = scmp.eq.s32.totalorder %s26, 0
      %p213 = por %p211, %p212
      %p214 = scmp.ne.s32.totalorder %s200, %s201
      %p215 = scmp.eq.s32.totalorder %s27, 1
      %p216 = por %p214, %p215
      %p218 = scmp.ne.s32.totalorder %s201, %s217
      %p219 = scmp.eq.s32.totalorder %s27, 0
      %p220 = por %p218, %p219
      %s221 = ssub.s32 %s28, %s40
      %p222 = scmp.eq.s32.totalorder %s221, 0
      %s224 = sadd.s32 %s223, 1
      %s225 = scalar_select %p222, %s223, %s224
      %p228 = pneg %p222
      %p229 = scmp.eq.s32.totalorder %s21, 1
      %p230 = por %p228, %p229
      %p231 = scmp.ne.s32.totalorder %s223, %s226
      %p232 = scmp.eq.s32.totalorder %s21, 0
      %p233 = por %p231, %p232
      %p234 = scmp.ne.s32.totalorder %s223, %s226
      %p235 = scmp.eq.s32.totalorder %s26, 1
      %p236 = por %p234, %p235
      %p237 = scmp.ne.s32.totalorder %s226, %s227
      %p238 = scmp.eq.s32.totalorder %s26, 0
      %p239 = por %p237, %p238
      %p240 = scmp.ne.s32.totalorder %s226, %s227
      %p241 = scmp.eq.s32.totalorder %s27, 1
      %p242 = por %p240, %p241
      %p244 = scmp.ne.s32.totalorder %s227, %s243
      %p245 = scmp.eq.s32.totalorder %s27, 0
      %p246 = por %p244, %p245
      %s247 = ssub.s32 %s28, %s40
      %p248 = scmp.eq.s32.totalorder %s247, 0
      %s250 = sadd.s32 %s249, 1
      %s251 = scalar_select %p248, %s249, %s250
      %p254 = pneg %p248
      %p255 = scmp.eq.s32.totalorder %s21, 1
      %p256 = por %p254, %p255
      %p257 = scmp.ne.s32.totalorder %s249, %s252
      %p258 = scmp.eq.s32.totalorder %s21, 0
      %p259 = por %p257, %p258
      %p260 = scmp.ne.s32.totalorder %s249, %s252
      %p261 = scmp.eq.s32.totalorder %s26, 1
      %p262 = por %p260, %p261
      %p263 = scmp.ne.s32.totalorder %s252, %s253
      %p264 = scmp.eq.s32.totalorder %s26, 0
      %p265 = por %p263, %p264
      %p266 = scmp.ne.s32.totalorder %s252, %s253
      %p267 = scmp.eq.s32.totalorder %s27, 1
      %p268 = por %p266, %p267
      %p270 = scmp.ne.s32.totalorder %s253, %s269
      %p271 = scmp.eq.s32.totalorder %s27, 0
      %p272 = por %p270, %p271
      %p273 = scmp.le.s32.totalorder 1, %s21
      %p274 = scmp.lt.s32.totalorder %s21, 3
      %p275 = pnand %p273, %p274
      %p276 = pneg %p275
      // Predicated region
      $region9: #{_forward_padded.1} parent=5 // pred_check
        _
      $region10: #{_forward_padded.1} parent=5 // pred_check_branch
        %278 = sbr.rel (%p275) target = $region12
      $region11: #{_forward_padded.1} parent=5 // pred_region
        %s279 = ssub.s32 %s21, 1
        // Predicated region
        $region13: #{_forward_padded.1} parent=11 // pred_check
          %p280 = pneg %p82
        $region14: #{_forward_padded.1} parent=11 // pred_check_branch
          %282 = sbr.rel (%p280) target = $region16
        $region15: #{_forward_padded.1} parent=11 // pred_region
          _
        $region16: #{_forward_padded.1} parent=11 // pred_fallthru
          _
        // Predicated region
        $region17: #{_forward_padded.1} parent=11 // pred_check
          %p283 = pneg %p103
        $region18: #{_forward_padded.1} parent=11 // pred_check_branch
          %285 = sbr.rel (%p283) target = $region20
        $region19: #{_forward_padded.1} parent=11 // pred_region
          _
        $region20: #{_forward_padded.1} parent=11 // pred_fallthru
          _
        // Predicated region
        $region21: #{_forward_padded.1} parent=11 // pred_check
          %p286 = pneg %p124
        $region22: #{_forward_padded.1} parent=11 // pred_check_branch
          %288 = sbr.rel (%p286) target = $region24
        $region23: #{_forward_padded.1} parent=11 // pred_region
          _
        $region24: #{_forward_padded.1} parent=11 // pred_fallthru
          _
        // Predicated region
        $region25: #{_forward_padded.1} parent=11 // pred_check
          %p289 = pneg %p145
        $region26: #{_forward_padded.1} parent=11 // pred_check_branch
          %291 = sbr.rel (%p289) target = $region28
        $region27: #{_forward_padded.1} parent=11 // pred_region
          _
        $region28: #{_forward_padded.1} parent=11 // pred_fallthru
          _
        // Predicated region
        $region29: #{_forward_padded.1} parent=11 // pred_check
          %p292 = pneg %p166
        $region30: #{_forward_padded.1} parent=11 // pred_check_branch
          %294 = sbr.rel (%p292) target = $region32
        $region31: #{_forward_padded.1} parent=11 // pred_region
          %s296 = ssub.s32 16, 16
          %297 = vsyncadd [#allocation6], %s296
          %s299 = sshll.u32 %s5, 4
          %s300 = int_to_ptr.vmem [resolvable:$true] %s299
          %302 = dma.vmem_to_smem %s300, 16, [#allocation4], [#allocation6]
        $region32: #{_forward_padded.1} parent=11 // pred_fallthru
          _
        // Predicated region
        $region33: #{_forward_padded.1} parent=11 // pred_check
          %p303 = pneg %p187
        $region34: #{_forward_padded.1} parent=11 // pred_check_branch
          %305 = sbr.rel (%p303) target = $region36
        $region35: #{_forward_padded.1} parent=11 // pred_region
          _
        $region36: #{_forward_padded.1} parent=11 // pred_fallthru
          _
      $region12: #{_forward_padded.1} parent=5 // pred_fallthru
        _
      %p306 = scmp.lt.s32.totalorder %s21, 2
      // Predicated region
      $region37: #{_forward_padded.1} parent=5 // pred_check
        %p307 = pneg %p306
      $region38: #{_forward_padded.1} parent=5 // pred_check_branch
        %309 = sbr.rel (%p307) target = $region40
      $region39: #{_forward_padded.1} parent=5 // pred_region
        // Predicated region
        $region41: #{_forward_padded.1} parent=39 // pred_check
          %p310 = pneg %p55
        $region42: #{_forward_padded.1} parent=39 // pred_check_branch
          %312 = sbr.rel (%p310) target = $region44
        $region43: #{_forward_padded.1} parent=39 // pred_region
          %s313 = smul.u32 2, %s29
          %p314 = scmp.lt.s32.totalorder %s28, 1
          %s315 = scalar_select %p314, %s28, 1
          %p316 = scmp.lt.s32.totalorder %s313, 1
          %s317 = scalar_select %p316, %s313, 1
          %s318 = smul.addr %s315, 2
          %s319 = sadd.s32 %s317, %s318
          %s320 = smul.addr %s319, 4
          %s321 = scalar_lea.vmem %s0, %s320
          %s322 = smul.u32 2, %s29
        $region44: #{_forward_padded.1} parent=39 // pred_fallthru
          _
      $region40: #{_forward_padded.1} parent=5 // pred_fallthru
        _
      %p323 = scmp.le.s32.totalorder 1, %s21
      %p324 = scmp.lt.s32.totalorder %s21, 3
      %p325 = pnand %p323, %p324
      %p326 = pneg %p325
      // Predicated region
      $region45: #{_forward_padded.1} parent=5 // pred_check
        _
      $region46: #{_forward_padded.1} parent=5 // pred_check_branch
        %328 = sbr.rel (%p325) target = $region48
      $region47: #{_forward_padded.1} parent=5 // pred_region
        %s329 = ssub.s32 %s21, 1
        // Predicated region
        $region49: #{_forward_padded.1} parent=47 // pred_check
          %p330 = pneg %p166
        $region50: #{_forward_padded.1} parent=47 // pred_check_branch
          %332 = sbr.rel (%p330) target = $region52
        $region51: #{_forward_padded.1} parent=47 // pred_region
          %333 = dma.done [#allocation6], 16
        $region52: #{_forward_padded.1} parent=47 // pred_fallthru
          _
        %334 = sfence
        %s335 = smul.u32 2, %s31
        %p336 = scmp.lt.s32.totalorder %s30, 1
        %s337 = scalar_select %p336, %s30, 1
        %p338 = scmp.lt.s32.totalorder %s335, 1
        %s339 = scalar_select %p338, %s335, 1
        %s340 = smul.addr %s337, 2
        %s341 = sadd.s32 %s339, %s340
        %s342 = smul.addr %s341, 4
        %s343 = scalar_lea.vmem %s0, %s342
        %p344 = pneg %p61
        %p345 = pneg %p58
        %p346 = pneg %p82
        %p347 = pneg %p79
        %p348 = pneg %p103
        %p349 = pneg %p100
        %p350 = pneg %p124
        %p351 = pneg %p121
        %p352 = pneg %p145
        %p353 = pneg %p142
        %p354 = pneg %p166
        %p355 = pneg %p163
        %p356 = pneg %p187
        %p357 = pneg %p184
        %p358 = pneg %p213
        %p359 = pneg %p210
        %s360 = sand.u32 %s200, 1
        %s361 = scalar_lea.sflag [#allocation5], %s360
        %s362 = sand.u32 %s200, 1
        %s363 = scalar_lea.vmem [#allocation7], %s362
        %p364 = pneg %p239
        %p365 = pneg %p236
        %p366 = scmp.lt.s32.totalorder %s30, 1
        %s367 = scalar_select %p366, %s30, 1
        %s368 = scalar_lea.vmem %s8, %s367
        %p369 = pneg %p265
        %p370 = pneg %p262
        %p371 = scmp.lt.s32.totalorder %s30, 1
        %s372 = scalar_select %p371, %s30, 1
        %s373 = scalar_lea.vmem %s9, %s372
        %s374 = smul.u32 2, %s31
        %p375 = scmp.lt.s32.totalorder %s30, 1
        %s376 = scalar_select %p375, %s30, 1
        %p377 = scmp.lt.s32.totalorder %s374, 1
        %s378 = scalar_select %p377, %s374, 1
        %s379 = smul.addr %s376, 2
        %s380 = sadd.s32 %s378, %s379
        %s381 = smul.addr %s380, 4
        %s382 = scalar_lea.vmem %s0, %s381
        %s383 = smul.u32 2, %s31
        %p384 = scmp.lt.s32.totalorder %s30, 1
        %s385 = scalar_select %p384, %s30, 1
        %s386 = scalar_lea.vmem %s8, %s385
        %p387 = scmp.lt.s32.totalorder %s30, 1
        %s388 = scalar_select %p387, %s30, 1
        %s389 = scalar_lea.vmem %s9, %s388
        %p392 = scmp.eq.s32.totalorder %s31, 0
        // Predicated region
        $region53: #{_forward_padded.1} parent=47 // pred_check
          %p393 = pneg %p392
        $region54: #{_forward_padded.1} parent=47 // pred_check_branch
          %395 = sbr.rel (%p393) target = $region56
        $region55: #{_forward_padded.1} parent=47 // pred_region
          %vm396 = vcmask 253952
          %397 = vst.msk [vmem:[#allocation2] sm:$0x1] %vm396, 0.0
        $region56: #{_forward_padded.1} parent=47 // pred_fallthru
          _
        %v398 = vld [vmem:[#allocation2] sm:$0x1]
        %v399 = vld [vmem:[%s382] sm:$0xf]
        %v400 = vld [vmem:[%s382 + $0x4] sm:$0xf]
        %v403 = vunpack.c.l.b16 %v399
        %v404 = vunpack.c.l.b16 %v400
        %v405 = vpack.c.b16 %v404, %v403
        %vm407 = vcmask 130048
        %v409 = vsel %vm407, 1065369472, 0
        %411 = vmatprep.subr.bf16.mxu0 0
        %412 = vmatpush1.bf16.msra.mxu0 %v405
        %413 = vmatprep.subr.bf16.mxu0 0
        %414 = vmatpush1.bf16.msra.mxu0 0
        %415 = vmatprep.subr.bf16.mxu0 0
        %416 = vmatpush1.bf16.msra.mxu0 0
        %417 = vmatprep.subr.bf16.mxu0 0
        %418 = vmatpush1.bf16.msra.mxu0 0
        %419 = vmatprep.subr.bf16.mxu0 0
        %420 = vmatpush1.bf16.msra.mxu0 0
        %421 = vmatprep.subr.bf16.mxu0 0
        %422 = vmatpush1.bf16.msra.mxu0 0
        %423 = vmatprep.subr.bf16.mxu0 0
        %424 = vmatpush1.bf16.msra.mxu0 0
        %425 = vmatprep.subr.bf16.mxu0 0
        %426 = vmatpush1.bf16.msra.mxu0 0
        %427 = vmatprep.subr.bf16.mxu0 0
        %428 = vmatpush1.bf16.msra.mxu0 0
        %429 = vmatprep.subr.bf16.mxu0 0
        %430 = vmatpush1.bf16.msra.mxu0 0
        %431 = vmatprep.subr.bf16.mxu0 0
        %432 = vmatpush1.bf16.msra.mxu0 0
        %433 = vmatprep.subr.bf16.mxu0 0
        %434 = vmatpush1.bf16.msra.mxu0 0
        %435 = vmatprep.subr.bf16.mxu0 0
        %436 = vmatpush1.bf16.msra.mxu0 0
        %437 = vmatprep.subr.bf16.mxu0 0
        %438 = vmatpush1.bf16.msra.mxu0 0
        %439 = vmatprep.subr.bf16.mxu0 0
        %440 = vmatpush1.bf16.msra.mxu0 0
        %441 = vmatprep.subr.bf16.mxu0 0
        %442 = vmatpush1.bf16.msra.mxu0 0
        %443 = vmatprep.mubr.bf16.mxu0 0
        %444 = vmatmul.mubr.bf16.gmra.mrb[0].mxu0 %v409
        %v445 = vpop.f32.mrb[0].mxu0
        %v446 = vadd.f32 0.0, %v445
        %v447 = vpop.f32.mrb[0].mxu0
        %v448 = vpop.f32.mrb[0].mxu0
        %v449 = vpop.f32.mrb[0].mxu0
        %450 = vdwg.mxu0
        %v451 = vadd.f32 %v398, %v446
        %vm452 = vcmask 253952
        %453 = vst.msk [vmem:[#allocation2] sm:$0x1] %vm452, %v451
        // Predicated region
        $region57: #{_forward_padded.1} parent=47 // pred_check
          %p454 = pneg %p392
        $region58: #{_forward_padded.1} parent=47 // pred_check_branch
          %456 = sbr.rel (%p454) target = $region60
        $region59: #{_forward_padded.1} parent=47 // pred_region
          %v457 = vld [vmem:[#allocation2] sm:$0x1]
          %s458 = sld [smem:[#allocation3]]
          %v459 = vstv %s458
          %v460 = vmul.f32 %v457, %v459
          %v461 = vld [vmem:[%s1] sm:$0xff]
          %v462 = vld [vmem:[%s1 + $0x8] sm:$0xff]
          %v463 = vld [vmem:[%s1 + $0x10] sm:$0xff]
          %v464 = vld [vmem:[%s1 + $0x18] sm:$0xff]
          %v465 = vld [vmem:[%s2] sm:$0x1]
          %vm466 = vcmask 261120
          %v468 = vsel %vm466, %v460, 0
          %470 = vmatprep.subr.mxu0 0.0
          %471 = vmatpush1.msra.mxu0 %v461
          %472 = vmatprep.subr.mxu0 0.0
          %473 = vmatpush1.msra.mxu0 %v462
          %474 = vmatprep.subr.mxu0 0.0
          %475 = vmatpush1.msra.mxu0 %v463
          %476 = vmatprep.subr.mxu0 0.0
          %477 = vmatpush1.msra.mxu0 %v464
          %478 = vmatprep.subr.mxu0 0.0
          %479 = vmatpush1.msra.mxu0 0.0
          %480 = vmatprep.subr.mxu0 0.0
          %481 = vmatpush1.msra.mxu0 0.0
          %482 = vmatprep.subr.mxu0 0.0
          %483 = vmatpush1.msra.mxu0 0.0
          %484 = vmatprep.subr.mxu0 0.0
          %485 = vmatpush1.msra.mxu0 0.0
          %486 = vmatprep.subr.mxu0 0.0
          %487 = vmatpush1.msra.mxu0 0.0
          %488 = vmatprep.subr.mxu0 0.0
          %489 = vmatpush1.msra.mxu0 0.0
          %490 = vmatprep.subr.mxu0 0.0
          %491 = vmatpush1.msra.mxu0 0.0
          %492 = vmatprep.subr.mxu0 0.0
          %493 = vmatpush1.msra.mxu0 0.0
          %494 = vmatprep.subr.mxu0 0.0
          %495 = vmatpush1.msra.mxu0 0.0
          %496 = vmatprep.subr.mxu0 0.0
          %497 = vmatpush1.msra.mxu0 0.0
          %498 = vmatprep.subr.mxu0 0.0
          %499 = vmatpush1.msra.mxu0 0.0
          %500 = vmatprep.subr.mxu0 0.0
          %501 = vmatpush1.msra.mxu0 0.0
          %502 = vmatprep.subr.mxu0 0.0
          %503 = vmatpush1.msra.mxu0 0.0
          %504 = vmatprep.subr.mxu0 0.0
          %505 = vmatpush1.msra.mxu0 0.0
          %506 = vmatprep.subr.mxu0 0.0
          %507 = vmatpush1.msra.mxu0 0.0
          %508 = vmatprep.subr.mxu0 0.0
          %509 = vmatpush1.msra.mxu0 0.0
          %510 = vmatprep.subr.mxu0 0.0
          %511 = vmatpush1.msra.mxu0 0.0
          %512 = vmatprep.subr.mxu0 0.0
          %513 = vmatpush1.msra.mxu0 0.0
          %514 = vmatprep.subr.mxu0 0.0
          %515 = vmatpush1.msra.mxu0 0.0
          %516 = vmatprep.subr.mxu0 0.0
          %517 = vmatpush1.msra.mxu0 0.0
          %518 = vmatprep.subr.mxu0 0.0
          %519 = vmatpush1.msra.mxu0 0.0
          %520 = vmatprep.subr.mxu0 0.0
          %521 = vmatpush1.msra.mxu0 0.0
          %522 = vmatprep.subr.mxu0 0.0
          %523 = vmatpush1.msra.mxu0 0.0
          %524 = vmatprep.subr.mxu0 0.0
          %525 = vmatpush1.msra.mxu0 0.0
          %526 = vmatprep.subr.mxu0 0.0
          %527 = vmatpush1.msra.mxu0 0.0
          %528 = vmatprep.subr.mxu0 0.0
          %529 = vmatpush1.msra.mxu0 0.0
          %530 = vmatprep.subr.mxu0 0.0
          %531 = vmatpush1.msra.mxu0 0.0
          %532 = vmatprep.subr.mxu0 0.0
          %533 = vmatpush1.msra.mxu0 0.0
          %534 = vmatprep.mubr.f32.mxu0 0.0
          %535 = vmatmul.mubr.f32.gmra.mrb[0].mxu0 %v468
          %v536 = vpop.f32.mrb[0].mxu0
          %v537 = vadd.f32 %v465, %v536
          %v538 = vpop.f32.mrb[0].mxu0
          %539 = vdwg.mxu0
          %v540 = vld [vmem:[%s3] sm:$0xff]
          %v541 = vld [vmem:[%s3 + $0x8] sm:$0xff]
          %v542 = vld [vmem:[%s4] sm:$0x1]
          %v544 = vsel %vm407, %v537, 0
          %546 = vmatprep.subr.mxu0 0.0
          %547 = vmatpush1.msra.mxu0 %v540
          %548 = vmatprep.subr.mxu0 0.0
          %549 = vmatpush1.msra.mxu0 %v541
          %550 = vmatprep.subr.mxu0 0.0
          %551 = vmatpush1.msra.mxu0 0.0
          %552 = vmatprep.subr.mxu0 0.0
          %553 = vmatpush1.msra.mxu0 0.0
          %554 = vmatprep.subr.mxu0 0.0
          %555 = vmatpush1.msra.mxu0 0.0
          %556 = vmatprep.subr.mxu0 0.0
          %557 = vmatpush1.msra.mxu0 0.0
          %558 = vmatprep.subr.mxu0 0.0
          %559 = vmatpush1.msra.mxu0 0.0
          %560 = vmatprep.subr.mxu0 0.0
          %561 = vmatpush1.msra.mxu0 0.0
          %562 = vmatprep.subr.mxu0 0.0
          %563 = vmatpush1.msra.mxu0 0.0
          %564 = vmatprep.subr.mxu0 0.0
          %565 = vmatpush1.msra.mxu0 0.0
          %566 = vmatprep.subr.mxu0 0.0
          %567 = vmatpush1.msra.mxu0 0.0
          %568 = vmatprep.subr.mxu0 0.0
          %569 = vmatpush1.msra.mxu0 0.0
          %570 = vmatprep.subr.mxu0 0.0
          %571 = vmatpush1.msra.mxu0 0.0
          %572 = vmatprep.subr.mxu0 0.0
          %573 = vmatpush1.msra.mxu0 0.0
          %574 = vmatprep.subr.mxu0 0.0
          %575 = vmatpush1.msra.mxu0 0.0
          %576 = vmatprep.subr.mxu0 0.0
          %577 = vmatpush1.msra.mxu0 0.0
          %578 = vmatprep.subr.mxu0 0.0
          %579 = vmatpush1.msra.mxu0 0.0
          %580 = vmatprep.subr.mxu0 0.0
          %581 = vmatpush1.msra.mxu0 0.0
          %582 = vmatprep.subr.mxu0 0.0
          %583 = vmatpush1.msra.mxu0 0.0
          %584 = vmatprep.subr.mxu0 0.0
          %585 = vmatpush1.msra.mxu0 0.0
          %586 = vmatprep.subr.mxu0 0.0
          %587 = vmatpush1.msra.mxu0 0.0
          %588 = vmatprep.subr.mxu0 0.0
          %589 = vmatpush1.msra.mxu0 0.0
          %590 = vmatprep.subr.mxu0 0.0
          %591 = vmatpush1.msra.mxu0 0.0
          %592 = vmatprep.subr.mxu0 0.0
          %593 = vmatpush1.msra.mxu0 0.0
          %594 = vmatprep.subr.mxu0 0.0
          %595 = vmatpush1.msra.mxu0 0.0
          %596 = vmatprep.subr.mxu0 0.0
          %597 = vmatpush1.msra.mxu0 0.0
          %598 = vmatprep.subr.mxu0 0.0
          %599 = vmatpush1.msra.mxu0 0.0
          %600 = vmatprep.subr.mxu0 0.0
          %601 = vmatpush1.msra.mxu0 0.0
          %602 = vmatprep.subr.mxu0 0.0
          %603 = vmatpush1.msra.mxu0 0.0
          %604 = vmatprep.subr.mxu0 0.0
          %605 = vmatpush1.msra.mxu0 0.0
          %606 = vmatprep.subr.mxu0 0.0
          %607 = vmatpush1.msra.mxu0 0.0
          %608 = vmatprep.subr.mxu0 0.0
          %609 = vmatpush1.msra.mxu0 0.0
          %610 = vmatprep.mubr.f32.mxu0 0.0
          %611 = vmatmul.mubr.f32.gmra.mrb[0].mxu0 %v544
          %v612 = vpop.f32.mrb[0].mxu0
          %v613 = vadd.f32 %v542, %v612
          %v614 = vpop.f32.mrb[0].mxu0
          %615 = vdwg.mxu0
          %vm616 = vcmask 73728
          %617 = vst.msk [vmem:[%s363] sm:$0x1] %vm616, %v613
          %v618 = vlaneseq
          %v619 = vand.u32 %v618, 127
          %v620 = vsel %vm616, %v613, -inf
          %621 = vmax.xlane.f32.xlu0 %v620
          %v622 = vpop.xlane.xlu0 %621
          %vm623 = vcmp.eq.f32.partialorder %v613, %v622
          %v624 = vsel %vm623, %v619, 10
          %v625 = vsel %vm616, %v624, 2147483647
          %v626 = vand.u32 %v625, 65535
          %v627 = vshra.s32 %v625, 16
          %v628 = vcvt.s32.f32 %v626
          %v629 = vcvt.s32.f32 %v627
          %630 = vmin.xlane.f32.xlu0 %v629
          %v631 = vpop.xlane.xlu0 %630
          %vm632 = vcmp.eq.f32.partialorder %v629, %v631
          %v633 = vsel %vm632, %v628, inf
          %634 = vmin.xlane.f32.xlu0 %v633
          %v635 = vpop.xlane.xlu0 %634
          %v636 = vcvt.f32.s32 %v635
          %v637 = vcvt.f32.s32 %v631
          %v638 = vshll.u32 %v637, 16
          %v639 = vadd.s32 %v638, %v636
          %vm640 = vcmask 0
          %641 = vst.msk [vmem:[%s386] sm:$0x1] %vm640, %v639
          %v642 = vsub.f32 %v613, %v622
          %v643 = vmul.f32 %v642, 1.442695
          %v644 = vpow.pop %v643
          %v645 = vsel %vm616, %v644, 0.0
          %646 = vadd.xlane.f32.xlu0 %v645
          %v647 = vpop.xlane.xlu0 %646
          %v648 = vlog2.pop %v647
          %v649 = vmul.f32 %v648, 0.6931472
          %v650 = vsub.f32 %v642, %v649
          %v651 = vlaneseq
          %v652 = vshrl.u32 %v651, 7
          %s653 = sld [smem:[#allocation4 + %s30]]
          %vm654 = vcmp.eq.s32.totalorder %v652, 0
          %v655 = vstv %s653
          %vm656 = vcmp.eq.s32.totalorder %v619, %v655
          %vm657 = vmand %vm654, %vm656
          %v658 = vsel %vm657, 1.0, 0.0
          %v659 = vmul.f32 %v650, %v658
          %v660 = vsel %vm616, %v659, 0.0
          %661 = vadd.xlane.f32.xlu0 %v660
          %v662 = vpop.xlane.xlu0 %661
          %v663 = vsub.f32 0.0, %v662
          %664 = vst.msk [vmem:[%s389] sm:$0x1] %vm640, %v663
        $region60: #{_forward_padded.1} parent=47 // pred_fallthru
          _
        %s665 = sand.u32 %s200, 1
        %s666 = scalar_lea.sflag [#allocation5], %s665
        %s667 = sand.u32 %s200, 1
        %s668 = scalar_lea.vmem [#allocation7], %s667
        %p669 = scmp.lt.s32.totalorder %s30, 1
        %s670 = scalar_select %p669, %s30, 1
        %s671 = scalar_lea.vmem %s8, %s670
        %p672 = scmp.lt.s32.totalorder %s30, 1
        %s673 = scalar_select %p672, %s30, 1
        %s674 = scalar_lea.vmem %s9, %s673
        // Predicated region
        $region61: #{_forward_padded.1} parent=47 // pred_check
          %p675 = pneg %p210
        $region62: #{_forward_padded.1} parent=47 // pred_check_branch
          %677 = sbr.rel (%p675) target = $region64
        $region63: #{_forward_padded.1} parent=47 // pred_region
          %s679 = ssub.s32 16, 16
          %680 = vsyncadd %s666, %s679
          %s681 = smul.addr %s30, 16
          %s682 = scalar_lea.hbm %s7, %s681
          %s684 = sshll.u32 %s668, 4
          %s685 = int_to_ptr.vmem [resolvable:$true] %s684
          %687 = dma.vmem_to_hbm [thread:$0]  %s685, 16, %s682, %s666
        $region64: #{_forward_padded.1} parent=47 // pred_fallthru
          _
        // Predicated region
        $region65: #{_forward_padded.1} parent=47 // pred_check
          %p688 = pneg %p236
        $region66: #{_forward_padded.1} parent=47 // pred_check_branch
          %690 = sbr.rel (%p688) target = $region68
        $region67: #{_forward_padded.1} parent=47 // pred_region
          _
        $region68: #{_forward_padded.1} parent=47 // pred_fallthru
          _
        // Predicated region
        $region69: #{_forward_padded.1} parent=47 // pred_check
          %p691 = pneg %p262
        $region70: #{_forward_padded.1} parent=47 // pred_check_branch
          %693 = sbr.rel (%p691) target = $region72
        $region71: #{_forward_padded.1} parent=47 // pred_region
          _
        $region72: #{_forward_padded.1} parent=47 // pred_fallthru
          _
      $region48: #{_forward_padded.1} parent=5 // pred_fallthru
        _
      %p694 = scmp.le.s32.totalorder 2, %s21
      // Predicated region
      $region73: #{_forward_padded.1} parent=5 // pred_check
        %p695 = pneg %p694
      $region74: #{_forward_padded.1} parent=5 // pred_check_branch
        %697 = sbr.rel (%p695) target = $region76
      $region75: #{_forward_padded.1} parent=5 // pred_region
        %s698 = ssub.s32 %s21, 2
        // Predicated region
        $region77: #{_forward_padded.1} parent=75 // pred_check
          %p699 = pneg %p216
        $region78: #{_forward_padded.1} parent=75 // pred_check_branch
          %701 = sbr.rel (%p699) target = $region80
        $region79: #{_forward_padded.1} parent=75 // pred_region
          %s702 = sand.u32 %s201, 1
          %s703 = scalar_lea.sflag [#allocation5], %s702
          %s704 = sand.u32 %s201, 1
          %s705 = scalar_lea.vmem [#allocation7], %s704
          %706 = dma.done %s703, 16
        $region80: #{_forward_padded.1} parent=75 // pred_fallthru
          _
        // Predicated region
        $region81: #{_forward_padded.1} parent=75 // pred_check
          %p707 = pneg %p242
        $region82: #{_forward_padded.1} parent=75 // pred_check_branch
          %709 = sbr.rel (%p707) target = $region84
        $region83: #{_forward_padded.1} parent=75 // pred_region
          %p710 = scmp.lt.s32.totalorder %s32, 1
          %s711 = scalar_select %p710, %s32, 1
          %s712 = scalar_lea.vmem %s8, %s711
        $region84: #{_forward_padded.1} parent=75 // pred_fallthru
          _
        // Predicated region
        $region85: #{_forward_padded.1} parent=75 // pred_check
          %p713 = pneg %p268
        $region86: #{_forward_padded.1} parent=75 // pred_check_branch
          %715 = sbr.rel (%p713) target = $region88
        $region87: #{_forward_padded.1} parent=75 // pred_region
          %p716 = scmp.lt.s32.totalorder %s32, 1
          %s717 = scalar_select %p716, %s32, 1
          %s718 = scalar_lea.vmem %s9, %s717
        $region88: #{_forward_padded.1} parent=75 // pred_fallthru
          _
      $region76: #{_forward_padded.1} parent=5 // pred_fallthru
        _
    $region6: #{_forward_padded.1} parent=1 // loop_footer
      %s25 = sadd.s32 1, %s21
    $region7: #{_forward_padded.1} parent=1 // loop_footer_branch
      %20 = sbr.rel target = $region3
    $region8: #{_forward_padded.1} parent=1 // loop_exit
      _
    %719 = vsyncpa [#allocation5], 1
    %s720 = scalar_lea.sflag [#allocation5], 1
    %721 = vsyncpa %s720, 1
    %722 = vsyncpa [#allocation6], 1
    %s723 = scalar_lea.sflag [#allocation6], 1
    %724 = vsyncpa %s723, 1

</llo_original>
